<compile_context>
chip_gen: v6e
topology: v6e:2x2x1
jax: 0.10.0
libtpu: 0.0.40
codegen_flags: <defaults>
</compile_context>

<pallas_src>
import math

import jax
import jax.numpy as jnp
from jax.experimental import pallas as pl
from jax.experimental.pallas import tpu as pltpu


# -----------------------------------------------------------------------------
# model hyper-parameters (small, consistent with the module)
# -----------------------------------------------------------------------------
SEQ = 8          # sequence length
BATCH = 2        # batch size
D_MODEL = 32     # d_model
NHEAD = 4        # nhead
DIM_FF = 64      # dim_feedforward
HEAD_DIM = D_MODEL // NHEAD
TOKENS = SEQ * BATCH
LN_EPS = 1e-5
NUM_VEC_ROWS = 8           # packed bias / LayerNorm rows


def _layernorm(x, gamma, beta, eps):
    # x: (T, D) f32, gamma/beta: (1, D) f32  (PyTorch LayerNorm: biased var, eps inside)
    mean = jnp.mean(x, axis=-1, keepdims=True)
    xc = x - mean
    var = jnp.mean(xc * xc, axis=-1, keepdims=True)
    return xc * jax.lax.rsqrt(var + eps) * gamma + beta


def _encoder_layer_kernel(
    x_ref,      # (T, D)       f32 tokens, row = s*BATCH + b
    wqkv_ref,   # (D, 3D)      bf16 in_proj_weight^T, Q columns pre-scaled by 1/sqrt(hd)
    wo_ref,     # (D, D)       bf16 out_proj.weight^T
    w1_ref,     # (D, F)       bf16 linear1.weight^T
    w2_ref,     # (F, D)       bf16 linear2.weight^T
    vec_ref,    # (8, 3D)      f32 packed biases / LN params, one vector per row (lane 0)
    const_ref,  # (H*T, D+T)   f32 [:, :D] = per-head column mask, [:, D:] = attn bias
    o_ref,      # (T, D)       f32
):
    f32 = jnp.float32
    bf16 = jnp.bfloat16

    x = x_ref[...]                                       # (16, 32) f32

    # ---- packed small vectors: static row slices at lane offset 0 (zero-cost views) --
    bqkv = vec_ref[0:1, :]                               # (1, 96)   (Q third pre-scaled)
    bo   = vec_ref[1:2, 0:D_MODEL]                       # (1, 32)
    b1   = vec_ref[2:3, 0:DIM_FF]                        # (1, 64)
    b2   = vec_ref[3:4, 0:D_MODEL]
    g1   = vec_ref[4:5, 0:D_MODEL]
    be1  = vec_ref[5:6, 0:D_MODEL]
    g2   = vec_ref[6:7, 0:D_MODEL]
    be2  = vec_ref[7:8, 0:D_MODEL]

    head_mask = const_ref[:, 0:D_MODEL]                  # (64, 32) 0/1
    attn_bias = const_ref[:, D_MODEL:D_MODEL + TOKENS]   # (64, 16) 0 / -1e30

    # ---- fused QKV projection: one bf16 MXU matmul for all tokens, f32 accumulate ----
    qkv = jnp.dot(x.astype(bf16), wqkv_ref[...],
                  preferred_element_type=f32) + bqkv     # (16, 96) f32
    q = qkv[:, 0:D_MODEL]                                # (16, 32)
    k = qkv[:, D_MODEL:2 * D_MODEL]                      # (16, 32)
    v = qkv[:, 2 * D_MODEL:3 * D_MODEL]                  # (16, 32)

    # ---- heads-on-sublanes attention ----
    # Replicate Q per head along sublanes (rows h*T + t) and zero the other heads'
    # columns; a full 32-wide contraction then yields every per-head score in one
    # (64,32) x (32,16)^T matmul.
    q_heads = jnp.concatenate([q] * NHEAD, axis=0) * head_mask         # (64, 32)
    s = jax.lax.dot_general(q_heads.astype(bf16), k.astype(bf16),
                            (((1,), (1,)), ((), ())),                  # q @ k^T
                            preferred_element_type=f32)                # (64, 16)

    # rows are (s, b)-interleaved; the precomputed additive bias blocks cross-batch
    # attention -> exact per-batch softmax.  Softmax math stays f32 on all gens.
    s = s + attn_bias
    s = s - jnp.max(s, axis=-1, keepdims=True)
    p = jnp.exp(s)
    p = p * pl.reciprocal(jnp.sum(p, axis=-1, keepdims=True), approx=False)

    # context for all heads in one (64,16) x (16,32) matmul; keep each head's own
    # 8-column block and fold the 4 head row-blocks back with 16-row sublane-aligned
    # slices + adds (no lane shuffles, no concatenate).
    ctx = jnp.dot(p.astype(bf16), v.astype(bf16),
                  preferred_element_type=f32) * head_mask              # (64, 32)
    attn = (ctx[0 * TOKENS:1 * TOKENS, :] + ctx[1 * TOKENS:2 * TOKENS, :]
            + ctx[2 * TOKENS:3 * TOKENS, :] + ctx[3 * TOKENS:4 * TOKENS, :])  # (16, 32)

    attn = jnp.dot(attn.astype(bf16), wo_ref[...],
                   preferred_element_type=f32) + bo

    # dropout1 is identity in eval mode; post-norm
    y = _layernorm(x + attn, g1, be1, LN_EPS)            # norm1, f32

    # ---- feed-forward block (relu; dropouts identity in eval mode) ----
    h1 = jnp.maximum(jnp.dot(y.astype(bf16), w1_ref[...],
                             preferred_element_type=f32) + b1, 0.0)
    ff = jnp.dot(h1.astype(bf16), w2_ref[...],
                 preferred_element_type=f32) + b2
    z = _layernorm(y + ff, g2, be2, LN_EPS)              # norm2, f32

    # Output is only 2 KB (16x32 f32): lane-dense repacking would add a relayout larger
    # than the handful of masked stores it removes, so the (T, D) store is kept as-is.
    o_ref[...] = z.astype(o_ref.dtype)


# -----------------------------------------------------------------------------
# wrapper: single pallas_call, single grid step, no transposes / relayouts
# -----------------------------------------------------------------------------
def transformer_encoder_layer(src, kp):
    """src: (seq, batch, d_model) f32 -> (seq, batch, d_model). kp = prepare_params()."""
    S, B, D = src.shape
    assert (S, B, D) == (SEQ, BATCH, D_MODEL)

    # leading-dim collapse only (row-major contiguous) -> no transpose, no relayout
    x_tokens = src.reshape(S * B, D)

    full = lambda shape: pl.BlockSpec(shape, lambda i: (0,) * len(shape))

    # NOTE: at larger sizes (multiple layers / decoder fusion), add a leading "parallel"
    # batch grid axis for v7x's second TensorCore, set vmem_limit_bytes explicitly, and
    # single-buffer the constant-index weight specs (pipeline_mode=pl.Buffered(1)).
    grid_spec = pltpu.PrefetchScalarGridSpec(
        num_scalar_prefetch=0,
        grid=(1,),                                    # whole batch in one grid step
        in_specs=[
            full((S * B, D)),                         # tokens
            full((D, 3 * D)),                         # in_proj^T (Q-scaled, bf16)
            full((D, D)),                             # out_proj^T (bf16)
            full((D, DIM_FF)),                        # linear1^T (bf16)
            full((DIM_FF, D)),                        # linear2^T (bf16)
            full((NUM_VEC_ROWS, 3 * D)),              # packed biases + LN params (f32)
            full((NHEAD * S * B, D + S * B)),         # head mask + attention bias (f32)
        ],
        out_specs=full((S * B, D)),
    )

    out = pl.pallas_call(
        _encoder_layer_kernel,
        out_shape=jax.ShapeDtypeStruct((S * B, D), jnp.float32),
        grid_spec=grid_spec,
        compiler_params=pltpu.CompilerParams(dimension_semantics=("arbitrary",)),
    )(
        x_tokens,
        kp["wqkv_t"], kp["wo_t"], kp["w1_t"], kp["w2_t"],
        kp["vec"], kp["attn_const"],
    )
    return out.reshape(S, B, D)                       # leading-dim split only


# -----------------------------------------------------------------------------
# parameters (PyTorch layout) + one-time kernel-layout preparation
# -----------------------------------------------------------------------------
def init_params(key):
    ks = jax.random.split(key, 8)

    def u(k, shape, fan_in):
        lim = 1.0 / math.sqrt(fan_in)
        return jax.random.uniform(k, shape, jnp.float32, -lim, lim)

    return {
        "in_proj_w": u(ks[0], (3 * D_MODEL, D_MODEL), D_MODEL),
        "in_proj_b": u(ks[1], (3 * D_MODEL,), D_MODEL),
        "out_w":     u(ks[2], (D_MODEL, D_MODEL), D_MODEL),
        "out_b":     u(ks[3], (D_MODEL,), D_MODEL),
        "w1":        u(ks[4], (DIM_FF, D_MODEL), D_MODEL),
        "b1":        u(ks[5], (DIM_FF,), D_MODEL),
        "w2":        u(ks[6], (D_MODEL, DIM_FF), DIM_FF),
        "b2":        u(ks[7], (D_MODEL,), DIM_FF),
        "ln1_g":     jnp.ones((D_MODEL,), jnp.float32),
        "ln1_b":     jnp.zeros((D_MODEL,), jnp.float32),
        "ln2_g":     jnp.ones((D_MODEL,), jnp.float32),
        "ln2_b":     jnp.zeros((D_MODEL,), jnp.float32),
    }


def prepare_params(p):
    """One-time layout prep (off the per-call path): transpose weights to (in, out),
    fold the 1/sqrt(head_dim) Q scale into wqkv/bqkv, cast matmul weights to bf16,
    pack all tiny vectors into one slab, and precompute the attention constants."""
    scale = 1.0 / math.sqrt(HEAD_DIM)
    col_scale = jnp.concatenate([
        jnp.full((D_MODEL,), scale, jnp.float32),
        jnp.ones((2 * D_MODEL,), jnp.float32),
    ])                                                           # scale Q third only

    wqkv_t = (p["in_proj_w"].T * col_scale[None, :]).astype(jnp.bfloat16)   # (D, 3D)
    bqkv = p["in_proj_b"] * col_scale                                        # (3D,)

    def row(v):
        r = jnp.zeros((3 * D_MODEL,), jnp.float32)
        return r.at[: v.shape[0]].set(v.astype(jnp.float32))

    vec = jnp.stack([
        row(bqkv), row(p["out_b"]), row(p["b1"]), row(p["b2"]),
        row(p["ln1_g"]), row(p["ln1_b"]), row(p["ln2_g"]), row(p["ln2_b"]),
    ], axis=0)                                                   # (8, 96) f32

    # per-head column mask: row h*T+t keeps columns [h*hd, (h+1)*hd)
    col_head = jnp.arange(D_MODEL) // HEAD_DIM                   # (32,)
    row_head = jnp.repeat(jnp.arange(NHEAD), TOKENS)             # (64,)
    head_mask = (row_head[:, None] == col_head[None, :]).astype(jnp.float32)  # (64,32)
    # cross-batch additive bias for (s, b)-interleaved tokens, tiled over heads
    tok = jnp.arange(TOKENS)
    bias_tt = jnp.where((tok[:, None] % BATCH) == (tok[None, :] % BATCH),
                        0.0, -1e30).astype(jnp.float32)          # (16, 16)
    attn_const = jnp.concatenate([head_mask, jnp.tile(bias_tt, (NHEAD, 1))],
                                 axis=1)                         # (64, 48) f32

    return {
        "wqkv_t": wqkv_t,
        "wo_t":   p["out_w"].T.astype(jnp.bfloat16),             # (D, D)
        "w1_t":   p["w1"].T.astype(jnp.bfloat16),                # (D, F)
        "w2_t":   p["w2"].T.astype(jnp.bfloat16),                # (F, D)
        "vec":    vec,
        "attn_const": attn_const,
    }


# -----------------------------------------------------------------------------
# pure-JAX f32 reference (PyTorch semantics, batch_first=False) for a sanity check
# -----------------------------------------------------------------------------
def reference(src, p):
    x = jnp.transpose(src, (1, 0, 2))          # (B, S, D) — plain-XLA check only

    def ln(v, g, b):
        m = jnp.mean(v, axis=-1, keepdims=True)
        c = v - m
        var = jnp.mean(c * c, axis=-1, keepdims=True)
        return c * jax.lax.rsqrt(var + LN_EPS) * g + b

    qkv = x @ p["in_proj_w"].T + p["in_proj_b"]
    q, k, v = jnp.split(qkv, 3, axis=-1)
    B, S, D = x.shape
    qh = q.reshape(B, S, NHEAD, HEAD_DIM).transpose(0, 2, 1, 3)
    kh = k.reshape(B, S, NHEAD, HEAD_DIM).transpose(0, 2, 1, 3)
    vh = v.reshape(B, S, NHEAD, HEAD_DIM).transpose(0, 2, 1, 3)
    sc = jnp.einsum("bhqd,bhkd->bhqk", qh, kh) / math.sqrt(HEAD_DIM)
    pm = jax.nn.softmax(sc, axis=-1)
    a = jnp.einsum("bhqk,bhkd->bhqd", pm, vh).transpose(0, 2, 1, 3).reshape(B, S, D)
    a = a @ p["out_w"].T + p["out_b"]
    y = ln(x + a, p["ln1_g"], p["ln1_b"])
    h1 = jnp.maximum(y @ p["w1"].T + p["b1"], 0.0)
    ff = h1 @ p["w2"].T + p["b2"]
    z = ln(y + ff, p["ln2_g"], p["ln2_b"])
    return jnp.transpose(z, (1, 0, 2))


if __name__ == "__main__":
    key = jax.random.PRNGKey(0)
    k_src, k_par = jax.random.split(key)
    src = jax.random.normal(k_src, (SEQ, BATCH, D_MODEL), jnp.float32)

    params = init_params(k_par)       # PyTorch-layout parameters
    kparams = prepare_params(params)  # one-time pre-transposed / packed kernel layout

    out = jax.block_until_ready(transformer_encoder_layer(src, kparams))
    ref = jax.block_until_ready(reference(src, params))

    assert out.shape == (SEQ, BATCH, D_MODEL)
    # Tolerance 2e-2: bf16 MXU operands (f32 accumulation) per the perf review bound the
    # error to ~1e-2 vs. the f32 reference; softmax/LayerNorm/residual math and the
    # softmax normalization are exact f32, so there is no further compounding source.
    assert jnp.allclose(out, ref, rtol=2e-2, atol=2e-2), "mismatch vs reference"
    print("KERNEL_OK")
</pallas_src>

<mosaic_0001>
module attributes {stable_mosaic.version = 11 : i64} {
  func.func @_encoder_layer_kernel(%arg0: i32, %arg1: memref<16x32xf32, #tpu.memory_space<vmem>>, %arg2: memref<32x96xbf16, #tpu.memory_space<vmem>>, %arg3: memref<32x32xbf16, #tpu.memory_space<vmem>>, %arg4: memref<32x64xbf16, #tpu.memory_space<vmem>>, %arg5: memref<64x32xbf16, #tpu.memory_space<vmem>>, %arg6: memref<8x96xf32, #tpu.memory_space<vmem>>, %arg7: memref<64x48xf32, #tpu.memory_space<vmem>>, %arg8: memref<16x32xf32, #tpu.memory_space<vmem>>) attributes {dimension_semantics = [#tpu.dimension_semantics<arbitrary>], iteration_bounds = array<i64: 1>, scalar_prefetch = 0 : i64, scratch_operands = 0 : i64, tpu.core_type = #tpu.core_type<tc>, window_params = [{pipeline_mode = #tpu.pipeline_mode<synchronous>, transform_indices = @transform_0, window_bounds = array<i64: 16, 32>}, {pipeline_mode = #tpu.pipeline_mode<synchronous>, transform_indices = @transform_1, window_bounds = array<i64: 32, 96>}, {pipeline_mode = #tpu.pipeline_mode<synchronous>, transform_indices = @transform_2, window_bounds = array<i64: 32, 32>}, {pipeline_mode = #tpu.pipeline_mode<synchronous>, transform_indices = @transform_3, window_bounds = array<i64: 32, 64>}, {pipeline_mode = #tpu.pipeline_mode<synchronous>, transform_indices = @transform_4, window_bounds = array<i64: 64, 32>}, {pipeline_mode = #tpu.pipeline_mode<synchronous>, transform_indices = @transform_5, window_bounds = array<i64: 8, 96>}, {pipeline_mode = #tpu.pipeline_mode<synchronous>, transform_indices = @transform_6, window_bounds = array<i64: 64, 48>}, {pipeline_mode = #tpu.pipeline_mode<synchronous>, transform_indices = @transform_7, window_bounds = array<i64: 16, 32>}]} {
    %c0 = arith.constant 0 : index
    %c0_0 = arith.constant 0 : index
    %0 = vector.load %arg1[%c0, %c0_0] : memref<16x32xf32, #tpu.memory_space<vmem>>, vector<16x32xf32>
    %c0_1 = arith.constant 0 : index
    %c0_2 = arith.constant 0 : index
    %1 = vector.load %arg6[%c0_1, %c0_2] : memref<8x96xf32, #tpu.memory_space<vmem>>, vector<1x96xf32>
    %c1 = arith.constant 1 : index
    %c0_3 = arith.constant 0 : index
    %2 = vector.load %arg6[%c1, %c0_3] : memref<8x96xf32, #tpu.memory_space<vmem>>, vector<1x32xf32>
    %c2 = arith.constant 2 : index
    %c0_4 = arith.constant 0 : index
    %3 = vector.load %arg6[%c2, %c0_4] : memref<8x96xf32, #tpu.memory_space<vmem>>, vector<1x64xf32>
    %c3 = arith.constant 3 : index
    %c0_5 = arith.constant 0 : index
    %4 = vector.load %arg6[%c3, %c0_5] : memref<8x96xf32, #tpu.memory_space<vmem>>, vector<1x32xf32>
    %c4 = arith.constant 4 : index
    %c0_6 = arith.constant 0 : index
    %5 = vector.load %arg6[%c4, %c0_6] : memref<8x96xf32, #tpu.memory_space<vmem>>, vector<1x32xf32>
    %c5 = arith.constant 5 : index
    %c0_7 = arith.constant 0 : index
    %6 = vector.load %arg6[%c5, %c0_7] : memref<8x96xf32, #tpu.memory_space<vmem>>, vector<1x32xf32>
    %c6 = arith.constant 6 : index
    %c0_8 = arith.constant 0 : index
    %7 = vector.load %arg6[%c6, %c0_8] : memref<8x96xf32, #tpu.memory_space<vmem>>, vector<1x32xf32>
    %c7 = arith.constant 7 : index
    %c0_9 = arith.constant 0 : index
    %8 = vector.load %arg6[%c7, %c0_9] : memref<8x96xf32, #tpu.memory_space<vmem>>, vector<1x32xf32>
    %c0_10 = arith.constant 0 : index
    %c0_11 = arith.constant 0 : index
    %9 = vector.load %arg7[%c0_10, %c0_11] : memref<64x48xf32, #tpu.memory_space<vmem>>, vector<64x32xf32>
    %c0_12 = arith.constant 0 : index
    %c32 = arith.constant 32 : index
    %10 = vector.load %arg7[%c0_12, %c32] : memref<64x48xf32, #tpu.memory_space<vmem>>, vector<64x16xf32>
    %11 = arith.truncf %0 : vector<16x32xf32> to vector<16x32xbf16>
    %c0_13 = arith.constant 0 : index
    %c0_14 = arith.constant 0 : index
    %12 = vector.load %arg2[%c0_13, %c0_14] : memref<32x96xbf16, #tpu.memory_space<vmem>>, vector<32x96xbf16>
    %cst = arith.constant dense<0.000000e+00> : vector<16x96xf32>
    %13 = tpu.matmul %11, %12, %cst {dimension_numbers = #tpu.dot_dimension_numbers<[1], [0], [0], [1], [0, 0, 1, 1], [], []>} : vector<16x32xbf16>, vector<32x96xbf16>, vector<16x96xf32> -> vector<16x96xf32>
    %14 = vector.broadcast %1 : vector<1x96xf32> to vector<16x96xf32>
    %15 = arith.addf %13, %14 : vector<16x96xf32>
    %16 = vector.extract_strided_slice %15 {offsets = [0, 0], sizes = [16, 32], strides = [1, 1]} : vector<16x96xf32> to vector<16x32xf32>
    %17 = vector.extract_strided_slice %15 {offsets = [0, 32], sizes = [16, 32], strides = [1, 1]} : vector<16x96xf32> to vector<16x32xf32>
    %18 = vector.extract_strided_slice %15 {offsets = [0, 64], sizes = [16, 32], strides = [1, 1]} : vector<16x96xf32> to vector<16x32xf32>
    %19 = tpu.concatenate %16, %16, %16, %16 in 0 : vector<16x32xf32>, vector<16x32xf32>, vector<16x32xf32>, vector<16x32xf32> -> vector<64x32xf32>
    %20 = arith.mulf %19, %9 : vector<64x32xf32>
    %21 = arith.truncf %20 : vector<64x32xf32> to vector<64x32xbf16>
    %22 = arith.truncf %17 : vector<16x32xf32> to vector<16x32xbf16>
    %cst_15 = arith.constant dense<0.000000e+00> : vector<64x16xf32>
    %23 = tpu.matmul %21, %22, %cst_15 {dimension_numbers = #tpu.dot_dimension_numbers<[1], [1], [0], [0], [0, 0, 1, 0], [], []>} : vector<64x32xbf16>, vector<16x32xbf16>, vector<64x16xf32> -> vector<64x16xf32>
    %24 = arith.addf %23, %10 : vector<64x16xf32>
    %cst_16 = arith.constant dense<0xFF800000> : vector<64xf32>
    %25 = vector.multi_reduction <maximumf>, %24, %cst_16 [1] : vector<64x16xf32> to vector<64xf32>
    %26 = vector.shape_cast %25 : vector<64xf32> to vector<64x1xf32>
    %27 = vector.broadcast %26 : vector<64x1xf32> to vector<64x16xf32>
    %28 = arith.subf %24, %27 : vector<64x16xf32>
    %29 = math.exp %28 : vector<64x16xf32>
    %cst_17 = arith.constant dense<0.000000e+00> : vector<64xf32>
    %30 = vector.multi_reduction <add>, %29, %cst_17 [1] : vector<64x16xf32> to vector<64xf32>
    %31 = vector.shape_cast %30 : vector<64xf32> to vector<64x1xf32>
    %32 = tpu.reciprocal %31 : vector<64x1xf32> -> vector<64x1xf32>
    %33 = vector.broadcast %32 : vector<64x1xf32> to vector<64x16xf32>
    %34 = arith.mulf %29, %33 : vector<64x16xf32>
    %35 = arith.truncf %34 : vector<64x16xf32> to vector<64x16xbf16>
    %36 = arith.truncf %18 : vector<16x32xf32> to vector<16x32xbf16>
    %cst_18 = arith.constant dense<0.000000e+00> : vector<64x32xf32>
    %37 = tpu.matmul %35, %36, %cst_18 {dimension_numbers = #tpu.dot_dimension_numbers<[1], [0], [0], [1], [0, 0, 1, 1], [], []>} : vector<64x16xbf16>, vector<16x32xbf16>, vector<64x32xf32> -> vector<64x32xf32>
    %38 = arith.mulf %37, %9 : vector<64x32xf32>
    %39 = vector.extract_strided_slice %38 {offsets = [0, 0], sizes = [16, 32], strides = [1, 1]} : vector<64x32xf32> to vector<16x32xf32>
    %40 = vector.extract_strided_slice %38 {offsets = [16, 0], sizes = [16, 32], strides = [1, 1]} : vector<64x32xf32> to vector<16x32xf32>
    %41 = arith.addf %39, %40 : vector<16x32xf32>
    %42 = vector.extract_strided_slice %38 {offsets = [32, 0], sizes = [16, 32], strides = [1, 1]} : vector<64x32xf32> to vector<16x32xf32>
    %43 = arith.addf %41, %42 : vector<16x32xf32>
    %44 = vector.extract_strided_slice %38 {offsets = [48, 0], sizes = [16, 32], strides = [1, 1]} : vector<64x32xf32> to vector<16x32xf32>
    %45 = arith.addf %43, %44 : vector<16x32xf32>
    %46 = arith.truncf %45 : vector<16x32xf32> to vector<16x32xbf16>
    %c0_19 = arith.constant 0 : index
    %c0_20 = arith.constant 0 : index
    %47 = vector.load %arg3[%c0_19, %c0_20] : memref<32x32xbf16, #tpu.memory_space<vmem>>, vector<32x32xbf16>
    %cst_21 = arith.constant dense<0.000000e+00> : vector<16x32xf32>
    %48 = tpu.matmul %46, %47, %cst_21 {dimension_numbers = #tpu.dot_dimension_numbers<[1], [0], [0], [1], [0, 0, 1, 1], [], []>} : vector<16x32xbf16>, vector<32x32xbf16>, vector<16x32xf32> -> vector<16x32xf32>
    %49 = vector.broadcast %2 : vector<1x32xf32> to vector<16x32xf32>
    %50 = arith.addf %48, %49 : vector<16x32xf32>
    %51 = arith.addf %0, %50 : vector<16x32xf32>
    %cst_22 = arith.constant dense<0.000000e+00> : vector<16xf32>
    %52 = vector.multi_reduction <add>, %51, %cst_22 [1] : vector<16x32xf32> to vector<16xf32>
    %53 = vector.shape_cast %52 : vector<16xf32> to vector<16x1xf32>
    %cst_23 = arith.constant 3.200000e+01 : f32
    %54 = vector.broadcast %cst_23 : f32 to vector<16x1xf32>
    %55 = arith.divf %53, %54 : vector<16x1xf32>
    %56 = vector.broadcast %55 : vector<16x1xf32> to vector<16x32xf32>
    %57 = arith.subf %51, %56 : vector<16x32xf32>
    %58 = arith.mulf %57, %57 : vector<16x32xf32>
    %cst_24 = arith.constant dense<0.000000e+00> : vector<16xf32>
    %59 = vector.multi_reduction <add>, %58, %cst_24 [1] : vector<16x32xf32> to vector<16xf32>
    %60 = vector.shape_cast %59 : vector<16xf32> to vector<16x1xf32>
    %cst_25 = arith.constant 3.200000e+01 : f32
    %61 = vector.broadcast %cst_25 : f32 to vector<16x1xf32>
    %62 = arith.divf %60, %61 : vector<16x1xf32>
    %cst_26 = arith.constant 9.99999974E-6 : f32
    %63 = vector.broadcast %cst_26 : f32 to vector<16x1xf32>
    %64 = arith.addf %62, %63 : vector<16x1xf32>
    %65 = math.rsqrt %64 : vector<16x1xf32>
    %66 = vector.broadcast %65 : vector<16x1xf32> to vector<16x32xf32>
    %67 = arith.mulf %57, %66 : vector<16x32xf32>
    %68 = vector.broadcast %5 : vector<1x32xf32> to vector<16x32xf32>
    %69 = arith.mulf %67, %68 : vector<16x32xf32>
    %70 = vector.broadcast %6 : vector<1x32xf32> to vector<16x32xf32>
    %71 = arith.addf %69, %70 : vector<16x32xf32>
    %72 = arith.truncf %71 : vector<16x32xf32> to vector<16x32xbf16>
    %c0_27 = arith.constant 0 : index
    %c0_28 = arith.constant 0 : index
    %73 = vector.load %arg4[%c0_27, %c0_28] : memref<32x64xbf16, #tpu.memory_space<vmem>>, vector<32x64xbf16>
    %cst_29 = arith.constant dense<0.000000e+00> : vector<16x64xf32>
    %74 = tpu.matmul %72, %73, %cst_29 {dimension_numbers = #tpu.dot_dimension_numbers<[1], [0], [0], [1], [0, 0, 1, 1], [], []>} : vector<16x32xbf16>, vector<32x64xbf16>, vector<16x64xf32> -> vector<16x64xf32>
    %75 = vector.broadcast %3 : vector<1x64xf32> to vector<16x64xf32>
    %76 = arith.addf %74, %75 : vector<16x64xf32>
    %cst_30 = arith.constant 0.000000e+00 : f32
    %77 = vector.broadcast %cst_30 : f32 to vector<16x64xf32>
    %78 = arith.maximumf %76, %77 : vector<16x64xf32>
    %79 = arith.truncf %78 : vector<16x64xf32> to vector<16x64xbf16>
    %c0_31 = arith.constant 0 : index
    %c0_32 = arith.constant 0 : index
    %80 = vector.load %arg5[%c0_31, %c0_32] : memref<64x32xbf16, #tpu.memory_space<vmem>>, vector<64x32xbf16>
    %cst_33 = arith.constant dense<0.000000e+00> : vector<16x32xf32>
    %81 = tpu.matmul %79, %80, %cst_33 {dimension_numbers = #tpu.dot_dimension_numbers<[1], [0], [0], [1], [0, 0, 1, 1], [], []>} : vector<16x64xbf16>, vector<64x32xbf16>, vector<16x32xf32> -> vector<16x32xf32>
    %82 = vector.broadcast %4 : vector<1x32xf32> to vector<16x32xf32>
    %83 = arith.addf %81, %82 : vector<16x32xf32>
    %84 = arith.addf %71, %83 : vector<16x32xf32>
    %cst_34 = arith.constant dense<0.000000e+00> : vector<16xf32>
    %85 = vector.multi_reduction <add>, %84, %cst_34 [1] : vector<16x32xf32> to vector<16xf32>
    %86 = vector.shape_cast %85 : vector<16xf32> to vector<16x1xf32>
    %cst_35 = arith.constant 3.200000e+01 : f32
    %87 = vector.broadcast %cst_35 : f32 to vector<16x1xf32>
    %88 = arith.divf %86, %87 : vector<16x1xf32>
    %89 = vector.broadcast %88 : vector<16x1xf32> to vector<16x32xf32>
    %90 = arith.subf %84, %89 : vector<16x32xf32>
    %91 = arith.mulf %90, %90 : vector<16x32xf32>
    %cst_36 = arith.constant dense<0.000000e+00> : vector<16xf32>
    %92 = vector.multi_reduction <add>, %91, %cst_36 [1] : vector<16x32xf32> to vector<16xf32>
    %93 = vector.shape_cast %92 : vector<16xf32> to vector<16x1xf32>
    %cst_37 = arith.constant 3.200000e+01 : f32
    %94 = vector.broadcast %cst_37 : f32 to vector<16x1xf32>
    %95 = arith.divf %93, %94 : vector<16x1xf32>
    %cst_38 = arith.constant 9.99999974E-6 : f32
    %96 = vector.broadcast %cst_38 : f32 to vector<16x1xf32>
    %97 = arith.addf %95, %96 : vector<16x1xf32>
    %98 = math.rsqrt %97 : vector<16x1xf32>
    %99 = vector.broadcast %98 : vector<16x1xf32> to vector<16x32xf32>
    %100 = arith.mulf %90, %99 : vector<16x32xf32>
    %101 = vector.broadcast %7 : vector<1x32xf32> to vector<16x32xf32>
    %102 = arith.mulf %100, %101 : vector<16x32xf32>
    %103 = vector.broadcast %8 : vector<1x32xf32> to vector<16x32xf32>
    %104 = arith.addf %102, %103 : vector<16x32xf32>
    %c0_39 = arith.constant 0 : index
    %c0_40 = arith.constant 0 : index
    %105 = vector.load %arg8[%c0_39, %c0_40] : memref<16x32xf32, #tpu.memory_space<vmem>>, vector<16x32xf32>
    tpu.vector_store %arg8[%c0_39, %c0_40], %104 {strides = array<i32>} : memref<16x32xf32, #tpu.memory_space<vmem>>, vector<16x32xf32>,
    return
  }
  func.func @transform_0(%arg0: i32) -> (i32, i32) {
    %c0_i32 = arith.constant 0 : i32
    %c0_i32_0 = arith.constant 0 : i32
    %c0_i32_1 = arith.constant 0 : i32
    return %c0_i32, %c0_i32_0 : i32, i32
  }
  func.func @transform_1(%arg0: i32) -> (i32, i32) {
    %c0_i32 = arith.constant 0 : i32
    %c0_i32_0 = arith.constant 0 : i32
    %c0_i32_1 = arith.constant 0 : i32
    return %c0_i32, %c0_i32_0 : i32, i32
  }
  func.func @transform_2(%arg0: i32) -> (i32, i32) {
    %c0_i32 = arith.constant 0 : i32
    %c0_i32_0 = arith.constant 0 : i32
    %c0_i32_1 = arith.constant 0 : i32
    return %c0_i32, %c0_i32_0 : i32, i32
  }
  func.func @transform_3(%arg0: i32) -> (i32, i32) {
    %c0_i32 = arith.constant 0 : i32
    %c0_i32_0 = arith.constant 0 : i32
    %c0_i32_1 = arith.constant 0 : i32
    return %c0_i32, %c0_i32_0 : i32, i32
  }
  func.func @transform_4(%arg0: i32) -> (i32, i32) {
    %c0_i32 = arith.constant 0 : i32
    %c0_i32_0 = arith.constant 0 : i32
    %c0_i32_1 = arith.constant 0 : i32
    return %c0_i32, %c0_i32_0 : i32, i32
  }
  func.func @transform_5(%arg0: i32) -> (i32, i32) {
    %c0_i32 = arith.constant 0 : i32
    %c0_i32_0 = arith.constant 0 : i32
    %c0_i32_1 = arith.constant 0 : i32
    return %c0_i32, %c0_i32_0 : i32, i32
  }
  func.func @transform_6(%arg0: i32) -> (i32, i32) {
    %c0_i32 = arith.constant 0 : i32
    %c0_i32_0 = arith.constant 0 : i32
    %c0_i32_1 = arith.constant 0 : i32
    return %c0_i32, %c0_i32_0 : i32, i32
  }
  func.func @transform_7(%arg0: i32) -> (i32, i32) {
    %c0_i32 = arith.constant 0 : i32
    %c0_i32_0 = arith.constant 0 : i32
    %c0_i32_1 = arith.constant 0 : i32
    return %c0_i32, %c0_i32_0 : i32, i32
  }
}

</mosaic_0001>

<llo_original>
// kernel: tpu_custom_call.1
$region0: #{tpu_custom_call.1}
  #allocation0 [shape = 'u32[]', space=smem, size = 0x4, offset = 0x4, fixed_abs, tag = 'smem constant byte address 0x4 - core index']
  #allocation1 [shape = 'u32[144,128]{1,0:T(1,128)}', space=vmem, size = 0x12000, scoped, tag = 'internal scratch']
  %s0 = inlined_call_operand.vmem [shape: f32[16,32], index: 0, kind: input, shape index: {}]
  %s1 = inlined_call_operand.vmem [shape: bf16[32,96], index: 1, kind: input, shape index: {}]
  %s2 = inlined_call_operand.vmem [shape: bf16[32,32], index: 2, kind: input, shape index: {}]
  %s3 = inlined_call_operand.vmem [shape: bf16[32,64], index: 3, kind: input, shape index: {}]
  %s4 = inlined_call_operand.vmem [shape: bf16[64,32], index: 4, kind: input, shape index: {}]
  %s5 = inlined_call_operand.vmem [shape: f32[8,96], index: 5, kind: input, shape index: {}]
  %s6 = inlined_call_operand.vmem [shape: f32[64,48], index: 6, kind: input, shape index: {}]
  %s7 = inlined_call_operand.hbm [shape: f32[16,32], index: 7, kind: output, shape index: {}]
  %s8 = sld [smem:[#allocation0]]
  $region38: #{tpu_custom_call.1} parent=0
    _
  %s10 = ssub.s32 1, %s8
  %s11 = scalar_select 0, %s10, %s8
  $region1: #{tpu_custom_call.1} parent=0
    #allocation2 [shape = 'u8[8192]{0}', space=vmem, size = 0x2000, scoped, tag = 'output window, operand 0, single buffered']
    #allocation3 [shape = 's32[1]{0}', space=sflag, size = 0x4, scoped, tag = 'scoped memory for tpu_custom_call.1']
    %12 = vsyncpa [#allocation3], 0
    // Predicated region
    $region2: #{tpu_custom_call.1} parent=1 // pred_check
      _
    $region3: #{tpu_custom_call.1} parent=1 // pred_check_branch
      %14 = sbr.rel (0) target = $region5
    $region4: #{tpu_custom_call.1} parent=1 // pred_region
      _
    $region5: #{tpu_custom_call.1} parent=1 // pred_fallthru
      _
    // Predicated region
    $region6: #{tpu_custom_call.1} parent=1 // pred_check
      _
    $region7: #{tpu_custom_call.1} parent=1 // pred_check_branch
      %16 = sbr.rel (0) target = $region9
    $region8: #{tpu_custom_call.1} parent=1 // pred_region
      _
    $region9: #{tpu_custom_call.1} parent=1 // pred_fallthru
      _
    // Predicated region
    $region10: #{tpu_custom_call.1} parent=1 // pred_check
      _
    $region11: #{tpu_custom_call.1} parent=1 // pred_check_branch
      %18 = sbr.rel (0) target = $region13
    $region12: #{tpu_custom_call.1} parent=1 // pred_region
      _
    $region13: #{tpu_custom_call.1} parent=1 // pred_fallthru
      _
    // Predicated region
    $region14: #{tpu_custom_call.1} parent=1 // pred_check
      _
    $region15: #{tpu_custom_call.1} parent=1 // pred_check_branch
      %20 = sbr.rel (0) target = $region17
    $region16: #{tpu_custom_call.1} parent=1 // pred_region
      _
    $region17: #{tpu_custom_call.1} parent=1 // pred_fallthru
      _
    // Predicated region
    $region18: #{tpu_custom_call.1} parent=1 // pred_check
      _
    $region19: #{tpu_custom_call.1} parent=1 // pred_check_branch
      %22 = sbr.rel (0) target = $region21
    $region20: #{tpu_custom_call.1} parent=1 // pred_region
      _
    $region21: #{tpu_custom_call.1} parent=1 // pred_fallthru
      _
    // Predicated region
    $region22: #{tpu_custom_call.1} parent=1 // pred_check
      _
    $region23: #{tpu_custom_call.1} parent=1 // pred_check_branch
      %24 = sbr.rel (0) target = $region25
    $region24: #{tpu_custom_call.1} parent=1 // pred_region
      _
    $region25: #{tpu_custom_call.1} parent=1 // pred_fallthru
      _
    // Predicated region
    $region26: #{tpu_custom_call.1} parent=1 // pred_check
      _
    $region27: #{tpu_custom_call.1} parent=1 // pred_check_branch
      %26 = sbr.rel (0) target = $region29
    $region28: #{tpu_custom_call.1} parent=1 // pred_region
      _
    $region29: #{tpu_custom_call.1} parent=1 // pred_fallthru
      _
    %v28 = vld [vmem:[%s0] sm:$0xff]
    %v29 = vld [vmem:[%s0 + $0x8] sm:$0xff]
    %v30 = vld [vmem:[%s5] sm:$0x1]
    %v31 = vld [vmem:[%s5 + $0x1] sm:$0x1]
    %v32 = vld [vmem:[%s5 + $0x2] sm:$0x1]
    %v33 = vld [vmem:[%s5 + $0x3] sm:$0x1]
    %v34 = vld [vmem:[%s5 + $0x4] sm:$0x1]
    %v35 = vld [vmem:[%s5 + $0x5] sm:$0x1]
    %v36 = vld [vmem:[%s5 + $0x6] sm:$0x1]
    %v37 = vld [vmem:[%s5 + $0x7] sm:$0x1]
    %v38 = vld [vmem:[%s6] sm:$0xff]
    %v39 = vld [vmem:[%s6 + $0x8] sm:$0xff]
    %v40 = vld [vmem:[%s6 + $0x10] sm:$0xff]
    %v41 = vld [vmem:[%s6 + $0x18] sm:$0xff]
    %v42 = vld [vmem:[%s6 + $0x20] sm:$0xff]
    %v43 = vld [vmem:[%s6 + $0x28] sm:$0xff]
    %v44 = vld [vmem:[%s6 + $0x30] sm:$0xff]
    %v45 = vld [vmem:[%s6 + $0x38] sm:$0xff]
    %v46 = vpack.c.bf16 %v29, %v28
    %v47 = vld [vmem:[%s1] sm:$0xf]
    %v48 = vld [vmem:[%s1 + $0x4] sm:$0xf]
    %v49 = vld [vmem:[%s1 + $0x8] sm:$0xf]
    %v50 = vld [vmem:[%s1 + $0xc] sm:$0xf]
    %v51 = vlaneseq
    %v52 = vshrl.u32 %v51, 7
    %v53 = vsub.s32 0, %v52
    %v54 = vrot.slane %v30, %v53
    %v59 = vunpack.c.l.b16 %v47
    %v60 = vunpack.c.l.b16 %v48
    %v61 = vunpack.c.l.b16 %v49
    %v62 = vunpack.c.l.b16 %v50
    %v63 = vpack.c.b16 %v60, %v59
    %v64 = vpack.c.b16 %v62, %v61
    %vm67 = vcmask 261120
    %v69 = vsel %vm67, %v46, 0
    %71 = vmatprep.subr.bf16.mxu0 0
    %72 = vmatpush1.bf16.msra.mxu0 0
    %73 = vmatprep.subr.bf16.mxu0 0
    %74 = vmatpush1.bf16.msra.mxu0 0
    %75 = vmatprep.subr.bf16.mxu0 0
    %76 = vmatpush1.bf16.msra.mxu0 0
    %77 = vmatprep.subr.bf16.mxu0 0
    %78 = vmatpush1.bf16.msra.mxu0 0
    %79 = vmatprep.subr.bf16.mxu0 0
    %80 = vmatpush1.bf16.msra.mxu0 0
    %81 = vmatprep.subr.bf16.mxu0 0
    %82 = vmatpush1.bf16.msra.mxu0 0
    %83 = vmatprep.subr.bf16.mxu0 0
    %84 = vmatpush1.bf16.msra.mxu0 %v64
    %85 = vmatprep.subr.bf16.mxu0 0
    %86 = vmatpush1.bf16.msra.mxu0 %v63
    %87 = vmatprep.subr.bf16.mxu0 0
    %88 = vmatpush2.bf16.msra.mxu0 0
    %89 = vmatprep.subr.bf16.mxu0 0
    %90 = vmatpush2.bf16.msra.mxu0 0
    %91 = vmatprep.subr.bf16.mxu0 0
    %92 = vmatpush2.bf16.msra.mxu0 0
    %93 = vmatprep.subr.bf16.mxu0 0
    %94 = vmatpush2.bf16.msra.mxu0 0
    %95 = vmatprep.subr.bf16.mxu0 0
    %96 = vmatpush2.bf16.msra.mxu0 0
    %97 = vmatprep.subr.bf16.mxu0 0
    %98 = vmatpush2.bf16.msra.mxu0 0
    %99 = vmatprep.subr.bf16.mxu0 0
    %100 = vmatpush2.bf16.msra.mxu0 0
    %101 = vmatprep.subr.bf16.mxu0 0
    %102 = vmatpush2.bf16.msra.mxu0 0
    %103 = vmatprep.mubr.bf16.mxu0 0
    %104 = vmatmul.mubr.bf16.gmra.mxu0 %v69
    %v105 = vpop.f32.mrf.mxu0
    %v106 = vadd.f32 %v54, %v105
    %v107 = vpop.f32.mrf.mxu0
    %v108 = vpop.f32.mrf.mxu0
    %v109 = vadd.f32 %v54, %v108
    %v110 = vpop.f32.mrf.mxu0
    %111 = vdwg.mxu0
    %v112 = vmul.f32 %v106, %v38
    %v113 = vmul.f32 %v109, %v39
    %v114 = vmul.f32 %v106, %v40
    %v115 = vmul.f32 %v109, %v41
    %v116 = vmul.f32 %v106, %v42
    %v117 = vmul.f32 %v109, %v43
    %v118 = vmul.f32 %v106, %v44
    %v119 = vmul.f32 %v109, %v45
    %v120 = vpack.c.bf16 %v113, %v112
    %v121 = vpack.c.bf16 %v115, %v114
    %v122 = vpack.c.bf16 %v117, %v116
    %v123 = vpack.c.bf16 %v119, %v118
    %v124 = vpack.c.bf16 %v109, %v106
    %126 = vrot.lane.b32.xlu0 %v124, 96
    %v127 = vpop.permute.xlu0 %126
    %136 = vrot.lane.b32.xlu0 %v38, 96
    %v137 = vpop.permute.xlu0 %136
    %138 = vrot.lane.b32.xlu0 %v39, 96
    %v139 = vpop.permute.xlu0 %138
    %140 = vrot.lane.b32.xlu0 %v40, 96
    %v141 = vpop.permute.xlu0 %140
    %142 = vrot.lane.b32.xlu0 %v41, 96
    %v143 = vpop.permute.xlu0 %142
    %144 = vrot.lane.b32.xlu0 %v42, 96
    %v145 = vpop.permute.xlu0 %144
    %146 = vrot.lane.b32.xlu0 %v43, 96
    %v147 = vpop.permute.xlu0 %146
    %148 = vrot.lane.b32.xlu0 %v44, 96
    %v149 = vpop.permute.xlu0 %148
    %150 = vrot.lane.b32.xlu0 %v45, 96
    %v151 = vpop.permute.xlu0 %150
    %v161 = vsel %vm67, %v120, 0
    %v164 = vsel %vm67, %v121, 0
    %v167 = vsel %vm67, %v122, 0
    %v170 = vsel %vm67, %v123, 0
    %v173 = vsel %vm67, %v127, 0
    %175 = vmatprep.subr.bf16.mxu0 0
    %176 = vmatpush1.bf16.xpose.msra.mxu0 0
    %177 = vmatprep.subr.bf16.mxu0 0
    %178 = vmatpush1.bf16.xpose.msra.mxu0 0
    %179 = vmatprep.subr.bf16.mxu0 0
    %180 = vmatpush1.bf16.xpose.msra.mxu0 0
    %181 = vmatprep.subr.bf16.mxu0 0
    %182 = vmatpush1.bf16.xpose.msra.mxu0 0
    %183 = vmatprep.subr.bf16.mxu0 0
    %184 = vmatpush1.bf16.xpose.msra.mxu0 0
    %185 = vmatprep.subr.bf16.mxu0 0
    %186 = vmatpush1.bf16.xpose.msra.mxu0 0
    %187 = vmatprep.subr.bf16.mxu0 0
    %188 = vmatpush1.bf16.xpose.msra.mxu0 0
    %189 = vmatprep.subr.bf16.mxu0 0
    %190 = vmatpush1.bf16.xpose.msra.mxu0 %v173
    %191 = vmatprep.subr.bf16.mxu0 0
    %192 = vmatpush2.bf16.xpose.msra.mxu0 0
    %193 = vmatprep.subr.bf16.mxu0 0
    %194 = vmatpush2.bf16.xpose.msra.mxu0 0
    %195 = vmatprep.subr.bf16.mxu0 0
    %196 = vmatpush2.bf16.xpose.msra.mxu0 0
    %197 = vmatprep.subr.bf16.mxu0 0
    %198 = vmatpush2.bf16.xpose.msra.mxu0 0
    %199 = vmatprep.subr.bf16.mxu0 0
    %200 = vmatpush2.bf16.xpose.msra.mxu0 0
    %201 = vmatprep.subr.bf16.mxu0 0
    %202 = vmatpush2.bf16.xpose.msra.mxu0 0
    %203 = vmatprep.subr.bf16.mxu0 0
    %204 = vmatpush2.bf16.xpose.msra.mxu0 0
    %205 = vmatprep.subr.bf16.mxu0 0
    %206 = vmatpush2.bf16.xpose.msra.mxu0 0
    %207 = vmatprep.mubr.bf16.mxu0 0
    %208 = vmatmul.mubr.bf16.gmra.mxu0 %v161
    %v209 = vpop.f32.mrf.mxu0
    %v210 = vadd.f32 %v137, %v209
    %v211 = vpop.f32.mrf.mxu0
    %v212 = vpop.f32.mrf.mxu0
    %v213 = vadd.f32 %v139, %v212
    %v214 = vpop.f32.mrf.mxu0
    %215 = vmatprep.mubr.bf16.mxu0 0
    %216 = vmatmul.mubr.bf16.gmra.mxu0 %v164
    %v217 = vpop.f32.mrf.mxu0
    %v218 = vadd.f32 %v141, %v217
    %v219 = vpop.f32.mrf.mxu0
    %v220 = vpop.f32.mrf.mxu0
    %v221 = vadd.f32 %v143, %v220
    %v222 = vpop.f32.mrf.mxu0
    %223 = vmatprep.mubr.bf16.mxu0 0
    %224 = vmatmul.mubr.bf16.gmra.mxu0 %v167
    %v225 = vpop.f32.mrf.mxu0
    %v226 = vadd.f32 %v145, %v225
    %v227 = vpop.f32.mrf.mxu0
    %v228 = vpop.f32.mrf.mxu0
    %v229 = vadd.f32 %v147, %v228
    %v230 = vpop.f32.mrf.mxu0
    %231 = vmatprep.mubr.bf16.mxu0 0
    %232 = vmatmul.mubr.bf16.gmra.mxu0 %v170
    %v233 = vpop.f32.mrf.mxu0
    %v234 = vadd.f32 %v149, %v233
    %v235 = vpop.f32.mrf.mxu0
    %v236 = vpop.f32.mrf.mxu0
    %v237 = vadd.f32 %v151, %v236
    %v238 = vpop.f32.mrf.mxu0
    %239 = vdwg.mxu0
    %vm240 = vcmask 130048
    %v241 = vsel %vm240, %v210, -inf
    %242 = vmax.xlane.f32.xlu0 %v241
    %v243 = vpop.xlane.xlu0 %242
    %v244 = vsel %vm240, %v213, -inf
    %245 = vmax.xlane.f32.xlu0 %v244
    %v246 = vpop.xlane.xlu0 %245
    %v247 = vsel %vm240, %v218, -inf
    %248 = vmax.xlane.f32.xlu0 %v247
    %v249 = vpop.xlane.xlu0 %248
    %v250 = vsel %vm240, %v221, -inf
    %251 = vmax.xlane.f32.xlu0 %v250
    %v252 = vpop.xlane.xlu0 %251
    %v253 = vsel %vm240, %v226, -inf
    %254 = vmax.xlane.f32.xlu0 %v253
    %v255 = vpop.xlane.xlu0 %254
    %v256 = vsel %vm240, %v229, -inf
    %257 = vmax.xlane.f32.xlu0 %v256
    %v258 = vpop.xlane.xlu0 %257
    %v259 = vsel %vm240, %v234, -inf
    %260 = vmax.xlane.f32.xlu0 %v259
    %v261 = vpop.xlane.xlu0 %260
    %v262 = vsel %vm240, %v237, -inf
    %263 = vmax.xlane.f32.xlu0 %v262
    %v264 = vpop.xlane.xlu0 %263
    %v265 = vsub.f32 %v210, %v243
    %v266 = vsub.f32 %v213, %v246
    %v267 = vsub.f32 %v218, %v249
    %v268 = vsub.f32 %v221, %v252
    %v269 = vsub.f32 %v226, %v255
    %v270 = vsub.f32 %v229, %v258
    %v271 = vsub.f32 %v234, %v261
    %v272 = vsub.f32 %v237, %v264
    %v273 = vmul.f32 %v265, 1.442695
    %v274 = vpow.pop %v273
    %v275 = vmul.f32 %v266, 1.442695
    %v276 = vpow.pop %v275
    %v277 = vmul.f32 %v267, 1.442695
    %v278 = vpow.pop %v277
    %v279 = vmul.f32 %v268, 1.442695
    %v280 = vpow.pop %v279
    %v281 = vmul.f32 %v269, 1.442695
    %v282 = vpow.pop %v281
    %v283 = vmul.f32 %v270, 1.442695
    %v284 = vpow.pop %v283
    %v285 = vmul.f32 %v271, 1.442695
    %v286 = vpow.pop %v285
    %v287 = vmul.f32 %v272, 1.442695
    %v288 = vpow.pop %v287
    %v289 = vsel %vm240, %v274, 0.0
    %290 = vadd.xlane.f32.xlu0 %v289
    %v291 = vpop.xlane.xlu0 %290
    %v292 = vsel %vm240, %v276, 0.0
    %293 = vadd.xlane.f32.xlu0 %v292
    %v294 = vpop.xlane.xlu0 %293
    %v295 = vsel %vm240, %v278, 0.0
    %296 = vadd.xlane.f32.xlu0 %v295
    %v297 = vpop.xlane.xlu0 %296
    %v298 = vsel %vm240, %v280, 0.0
    %299 = vadd.xlane.f32.xlu0 %v298
    %v300 = vpop.xlane.xlu0 %299
    %v301 = vsel %vm240, %v282, 0.0
    %302 = vadd.xlane.f32.xlu0 %v301
    %v303 = vpop.xlane.xlu0 %302
    %v304 = vsel %vm240, %v284, 0.0
    %305 = vadd.xlane.f32.xlu0 %v304
    %v306 = vpop.xlane.xlu0 %305
    %v307 = vsel %vm240, %v286, 0.0
    %308 = vadd.xlane.f32.xlu0 %v307
    %v309 = vpop.xlane.xlu0 %308
    %v310 = vsel %vm240, %v288, 0.0
    %311 = vadd.xlane.f32.xlu0 %v310
    %v312 = vpop.xlane.xlu0 %311
    %v313 = vrcp.pop %v291
    %v314 = vrcp.pop %v294
    %v315 = vrcp.pop %v297
    %v316 = vrcp.pop %v300
    %v317 = vrcp.pop %v303
    %v318 = vrcp.pop %v306
    %v319 = vrcp.pop %v309
    %v320 = vrcp.pop %v312
    %v321 = vmul.f32 %v274, %v313
    %v322 = vmul.f32 %v276, %v314
    %v323 = vmul.f32 %v278, %v315
    %v324 = vmul.f32 %v280, %v316
    %v325 = vmul.f32 %v282, %v317
    %v326 = vmul.f32 %v284, %v318
    %v327 = vmul.f32 %v286, %v319
    %v328 = vmul.f32 %v288, %v320
    %v329 = vpack.c.bf16 %v322, %v321
    %v330 = vpack.c.bf16 %v324, %v323
    %v331 = vpack.c.bf16 %v326, %v325
    %v332 = vpack.c.bf16 %v328, %v327
    %333 = vrot.lane.b32.xlu0 %v124, 64
    %v334 = vpop.permute.xlu0 %333
    %v337 = vsel %vm240, %v329, 0
    %v340 = vsel %vm240, %v330, 0
    %v343 = vsel %vm240, %v331, 0
    %v346 = vsel %vm240, %v332, 0
    %348 = vmatprep.subr.bf16.mxu0 0
    %349 = vmatpush1.bf16.msra.mxu0 0
    %350 = vmatprep.subr.bf16.mxu0 0
    %351 = vmatpush1.bf16.msra.mxu0 0
    %352 = vmatprep.subr.bf16.mxu0 0
    %353 = vmatpush1.bf16.msra.mxu0 0
    %354 = vmatprep.subr.bf16.mxu0 0
    %355 = vmatpush1.bf16.msra.mxu0 0
    %356 = vmatprep.subr.bf16.mxu0 0
    %357 = vmatpush1.bf16.msra.mxu0 0
    %358 = vmatprep.subr.bf16.mxu0 0
    %359 = vmatpush1.bf16.msra.mxu0 0
    %360 = vmatprep.subr.bf16.mxu0 0
    %361 = vmatpush1.bf16.msra.mxu0 0
    %362 = vmatprep.subr.bf16.mxu0 0
    %363 = vmatpush1.bf16.msra.mxu0 %v334
    %364 = vmatprep.subr.bf16.mxu0 0
    %365 = vmatpush2.bf16.msra.mxu0 0
    %366 = vmatprep.subr.bf16.mxu0 0
    %367 = vmatpush2.bf16.msra.mxu0 0
    %368 = vmatprep.subr.bf16.mxu0 0
    %369 = vmatpush2.bf16.msra.mxu0 0
    %370 = vmatprep.subr.bf16.mxu0 0
    %371 = vmatpush2.bf16.msra.mxu0 0
    %372 = vmatprep.subr.bf16.mxu0 0
    %373 = vmatpush2.bf16.msra.mxu0 0
    %374 = vmatprep.subr.bf16.mxu0 0
    %375 = vmatpush2.bf16.msra.mxu0 0
    %376 = vmatprep.subr.bf16.mxu0 0
    %377 = vmatpush2.bf16.msra.mxu0 0
    %378 = vmatprep.subr.bf16.mxu0 0
    %379 = vmatpush2.bf16.msra.mxu0 0
    %380 = vmatprep.mubr.bf16.mxu0 0
    %381 = vmatmul.mubr.bf16.gmra.mxu0 %v337
    %v382 = vpop.f32.mrf.mxu0
    %v383 = vadd.f32 0.0, %v382
    %v384 = vpop.f32.mrf.mxu0
    %v385 = vpop.f32.mrf.mxu0
    %v386 = vadd.f32 0.0, %v385
    %v387 = vpop.f32.mrf.mxu0
    %388 = vmatprep.mubr.bf16.mxu0 0
    %389 = vmatmul.mubr.bf16.gmra.mxu0 %v340
    %v390 = vpop.f32.mrf.mxu0
    %v391 = vadd.f32 0.0, %v390
    %v392 = vpop.f32.mrf.mxu0
    %v393 = vpop.f32.mrf.mxu0
    %v394 = vadd.f32 0.0, %v393
    %v395 = vpop.f32.mrf.mxu0
    %396 = vmatprep.mubr.bf16.mxu0 0
    %397 = vmatmul.mubr.bf16.gmra.mxu0 %v343
    %v398 = vpop.f32.mrf.mxu0
    %v399 = vadd.f32 0.0, %v398
    %v400 = vpop.f32.mrf.mxu0
    %v401 = vpop.f32.mrf.mxu0
    %v402 = vadd.f32 0.0, %v401
    %v403 = vpop.f32.mrf.mxu0
    %404 = vmatprep.mubr.bf16.mxu0 0
    %405 = vmatmul.mubr.bf16.gmra.mxu0 %v346
    %v406 = vpop.f32.mrf.mxu0
    %v407 = vadd.f32 0.0, %v406
    %v408 = vpop.f32.mrf.mxu0
    %v409 = vpop.f32.mrf.mxu0
    %v410 = vadd.f32 0.0, %v409
    %v411 = vpop.f32.mrf.mxu0
    %412 = vdwg.mxu0
    %v413 = vmul.f32 %v383, %v38
    %v414 = vmul.f32 %v386, %v39
    %v415 = vmul.f32 %v391, %v40
    %v416 = vmul.f32 %v394, %v41
    %v417 = vmul.f32 %v399, %v42
    %v418 = vmul.f32 %v402, %v43
    %v419 = vmul.f32 %v407, %v44
    %v420 = vmul.f32 %v410, %v45
    %v421 = vadd.f32 %v413, %v415
    %v422 = vadd.f32 %v414, %v416
    %v423 = vadd.f32 %v421, %v417
    %v424 = vadd.f32 %v422, %v418
    %v425 = vadd.f32 %v423, %v419
    %v426 = vadd.f32 %v424, %v420
    %v427 = vpack.c.bf16 %v426, %v425
    %v428 = vld [vmem:[%s2] sm:$0xf]
    %v429 = vld [vmem:[%s2 + $0x4] sm:$0xf]
    %v430 = vld [vmem:[%s2 + $0x8] sm:$0xf]
    %v431 = vld [vmem:[%s2 + $0xc] sm:$0xf]
    %v432 = vlaneseq
    %v433 = vshrl.u32 %v432, 7
    %v434 = vsub.s32 0, %v433
    %v435 = vrot.slane %v31, %v434
    %v440 = vunpack.c.l.b16 %v428
    %v441 = vunpack.c.l.b16 %v429
    %v442 = vunpack.c.l.b16 %v430
    %v443 = vunpack.c.l.b16 %v431
    %v444 = vpack.c.b16 %v441, %v440
    %v445 = vpack.c.b16 %v443, %v442
    %v449 = vsel %vm67, %v427, 0
    %451 = vmatprep.subr.bf16.mxu0 0
    %452 = vmatpush1.bf16.msra.mxu0 0
    %453 = vmatprep.subr.bf16.mxu0 0
    %454 = vmatpush1.bf16.msra.mxu0 0
    %455 = vmatprep.subr.bf16.mxu0 0
    %456 = vmatpush1.bf16.msra.mxu0 0
    %457 = vmatprep.subr.bf16.mxu0 0
    %458 = vmatpush1.bf16.msra.mxu0 0
    %459 = vmatprep.subr.bf16.mxu0 0
    %460 = vmatpush1.bf16.msra.mxu0 0
    %461 = vmatprep.subr.bf16.mxu0 0
    %462 = vmatpush1.bf16.msra.mxu0 0
    %463 = vmatprep.subr.bf16.mxu0 0
    %464 = vmatpush1.bf16.msra.mxu0 %v445
    %465 = vmatprep.subr.bf16.mxu0 0
    %466 = vmatpush1.bf16.msra.mxu0 %v444
    %467 = vmatprep.subr.bf16.mxu0 0
    %468 = vmatpush2.bf16.msra.mxu0 0
    %469 = vmatprep.subr.bf16.mxu0 0
    %470 = vmatpush2.bf16.msra.mxu0 0
    %471 = vmatprep.subr.bf16.mxu0 0
    %472 = vmatpush2.bf16.msra.mxu0 0
    %473 = vmatprep.subr.bf16.mxu0 0
    %474 = vmatpush2.bf16.msra.mxu0 0
    %475 = vmatprep.subr.bf16.mxu0 0
    %476 = vmatpush2.bf16.msra.mxu0 0
    %477 = vmatprep.subr.bf16.mxu0 0
    %478 = vmatpush2.bf16.msra.mxu0 0
    %479 = vmatprep.subr.bf16.mxu0 0
    %480 = vmatpush2.bf16.msra.mxu0 0
    %481 = vmatprep.subr.bf16.mxu0 0
    %482 = vmatpush2.bf16.msra.mxu0 0
    %483 = vmatprep.mubr.bf16.mxu0 0
    %484 = vmatmul.mubr.bf16.gmra.mxu0 %v449
    %v485 = vpop.f32.mrf.mxu0
    %v486 = vadd.f32 %v435, %v485
    %v487 = vpop.f32.mrf.mxu0
    %v488 = vpop.f32.mrf.mxu0
    %v489 = vadd.f32 %v435, %v488
    %v490 = vpop.f32.mrf.mxu0
    %491 = vdwg.mxu0
    %v492 = vadd.f32 %v28, %v486
    %v493 = vadd.f32 %v29, %v489
    %v494 = vsel %vm67, %v492, 0.0
    %495 = vadd.xlane.f32.xlu0 %v494
    %v496 = vpop.xlane.xlu0 %495
    %v497 = vsel %vm67, %v493, 0.0
    %498 = vadd.xlane.f32.xlu0 %v497
    %v499 = vpop.xlane.xlu0 %498
    %v500 = vrcp.pop 32.0
    %v501 = vmul.f32 %v496, %v500
    %v502 = vmul.f32 %v499, %v500
    %v503 = vsub.f32 %v492, %v501
    %v504 = vsub.f32 %v493, %v502
    %v505 = vmul.f32 %v503, %v503
    %v506 = vmul.f32 %v504, %v504
    %v507 = vsel %vm67, %v505, 0.0
    %508 = vadd.xlane.f32.xlu0 %v507
    %v509 = vpop.xlane.xlu0 %508
    %v510 = vsel %vm67, %v506, 0.0
    %511 = vadd.xlane.f32.xlu0 %v510
    %v512 = vpop.xlane.xlu0 %511
    %v513 = vmul.f32 %v509, %v500
    %v514 = vmul.f32 %v512, %v500
    %v515 = vadd.f32 %v513, 1e-05
    %v516 = vadd.f32 %v514, 1e-05
    %v517 = vrsqrt.pop %v515
    %v518 = vrsqrt.pop %v516
    %v519 = vmul.f32 %v503, %v517
    %v520 = vmul.f32 %v504, %v518
    %v521 = vlaneseq
    %v522 = vshrl.u32 %v521, 7
    %v523 = vsub.s32 0, %v522
    %v524 = vrot.slane %v34, %v523
    %v525 = vmul.f32 %v519, %v524
    %v526 = vmul.f32 %v520, %v524
    %v527 = vlaneseq
    %v528 = vshrl.u32 %v527, 7
    %v529 = vsub.s32 0, %v528
    %v530 = vrot.slane %v35, %v529
    %v531 = vadd.f32 %v525, %v530
    %v532 = vadd.f32 %v526, %v530
    %v533 = vpack.c.bf16 %v532, %v531
    %v534 = vld [vmem:[%s3] sm:$0xf]
    %v535 = vld [vmem:[%s3 + $0x4] sm:$0xf]
    %v536 = vld [vmem:[%s3 + $0x8] sm:$0xf]
    %v537 = vld [vmem:[%s3 + $0xc] sm:$0xf]
    %v538 = vlaneseq
    %v539 = vshrl.u32 %v538, 7
    %v540 = vsub.s32 0, %v539
    %v541 = vrot.slane %v32, %v540
    %v546 = vunpack.c.l.b16 %v534
    %v547 = vunpack.c.l.b16 %v535
    %v548 = vunpack.c.l.b16 %v536
    %v549 = vunpack.c.l.b16 %v537
    %v550 = vpack.c.b16 %v547, %v546
    %v551 = vpack.c.b16 %v549, %v548
    %v555 = vsel %vm67, %v533, 0
    %557 = vmatprep.subr.bf16.mxu0 0
    %558 = vmatpush1.bf16.msra.mxu0 0
    %559 = vmatprep.subr.bf16.mxu0 0
    %560 = vmatpush1.bf16.msra.mxu0 0
    %561 = vmatprep.subr.bf16.mxu0 0
    %562 = vmatpush1.bf16.msra.mxu0 0
    %563 = vmatprep.subr.bf16.mxu0 0
    %564 = vmatpush1.bf16.msra.mxu0 0
    %565 = vmatprep.subr.bf16.mxu0 0
    %566 = vmatpush1.bf16.msra.mxu0 0
    %567 = vmatprep.subr.bf16.mxu0 0
    %568 = vmatpush1.bf16.msra.mxu0 0
    %569 = vmatprep.subr.bf16.mxu0 0
    %570 = vmatpush1.bf16.msra.mxu0 %v551
    %571 = vmatprep.subr.bf16.mxu0 0
    %572 = vmatpush1.bf16.msra.mxu0 %v550
    %573 = vmatprep.subr.bf16.mxu0 0
    %574 = vmatpush2.bf16.msra.mxu0 0
    %575 = vmatprep.subr.bf16.mxu0 0
    %576 = vmatpush2.bf16.msra.mxu0 0
    %577 = vmatprep.subr.bf16.mxu0 0
    %578 = vmatpush2.bf16.msra.mxu0 0
    %579 = vmatprep.subr.bf16.mxu0 0
    %580 = vmatpush2.bf16.msra.mxu0 0
    %581 = vmatprep.subr.bf16.mxu0 0
    %582 = vmatpush2.bf16.msra.mxu0 0
    %583 = vmatprep.subr.bf16.mxu0 0
    %584 = vmatpush2.bf16.msra.mxu0 0
    %585 = vmatprep.subr.bf16.mxu0 0
    %586 = vmatpush2.bf16.msra.mxu0 0
    %587 = vmatprep.subr.bf16.mxu0 0
    %588 = vmatpush2.bf16.msra.mxu0 0
    %589 = vmatprep.mubr.bf16.mxu0 0
    %590 = vmatmul.mubr.bf16.gmra.mxu0 %v555
    %v591 = vpop.f32.mrf.mxu0
    %v592 = vadd.f32 %v541, %v591
    %v593 = vpop.f32.mrf.mxu0
    %v594 = vpop.f32.mrf.mxu0
    %v595 = vadd.f32 %v541, %v594
    %v596 = vpop.f32.mrf.mxu0
    %597 = vdwg.mxu0
    %v598 = vmax.f32 %v592, 0.0
    %v599 = vmax.f32 %v595, 0.0
    %v600 = vpack.c.bf16 %v599, %v598
    %v601 = vld [vmem:[%s4] sm:$0xf]
    %v602 = vld [vmem:[%s4 + $0x4] sm:$0xf]
    %v603 = vld [vmem:[%s4 + $0x8] sm:$0xf]
    %v604 = vld [vmem:[%s4 + $0xc] sm:$0xf]
    %v605 = vld [vmem:[%s4 + $0x10] sm:$0xf]
    %v606 = vld [vmem:[%s4 + $0x14] sm:$0xf]
    %v607 = vld [vmem:[%s4 + $0x18] sm:$0xf]
    %v608 = vld [vmem:[%s4 + $0x1c] sm:$0xf]
    %v609 = vlaneseq
    %v610 = vshrl.u32 %v609, 7
    %v611 = vsub.s32 0, %v610
    %v612 = vrot.slane %v33, %v611
    %v621 = vunpack.c.l.b16 %v601
    %v622 = vunpack.c.l.b16 %v602
    %v623 = vunpack.c.l.b16 %v603
    %v624 = vunpack.c.l.b16 %v604
    %v625 = vunpack.c.l.b16 %v605
    %v626 = vunpack.c.l.b16 %v606
    %v627 = vunpack.c.l.b16 %v607
    %v628 = vunpack.c.l.b16 %v608
    %v629 = vpack.c.b16 %v622, %v621
    %v630 = vpack.c.b16 %v624, %v623
    %v631 = vpack.c.b16 %v626, %v625
    %v632 = vpack.c.b16 %v628, %v627
    %vm637 = vcmask 523264
    %v639 = vsel %vm637, %v600, 0
    %641 = vmatprep.subr.bf16.mxu0 0
    %642 = vmatpush1.bf16.msra.mxu0 0
    %643 = vmatprep.subr.bf16.mxu0 0
    %644 = vmatpush1.bf16.msra.mxu0 0
    %645 = vmatprep.subr.bf16.mxu0 0
    %646 = vmatpush1.bf16.msra.mxu0 0
    %647 = vmatprep.subr.bf16.mxu0 0
    %648 = vmatpush1.bf16.msra.mxu0 0
    %649 = vmatprep.subr.bf16.mxu0 0
    %650 = vmatpush1.bf16.msra.mxu0 %v632
    %651 = vmatprep.subr.bf16.mxu0 0
    %652 = vmatpush1.bf16.msra.mxu0 %v631
    %653 = vmatprep.subr.bf16.mxu0 0
    %654 = vmatpush1.bf16.msra.mxu0 %v630
    %655 = vmatprep.subr.bf16.mxu0 0
    %656 = vmatpush1.bf16.msra.mxu0 %v629
    %657 = vmatprep.subr.bf16.mxu0 0
    %658 = vmatpush2.bf16.msra.mxu0 0
    %659 = vmatprep.subr.bf16.mxu0 0
    %660 = vmatpush2.bf16.msra.mxu0 0
    %661 = vmatprep.subr.bf16.mxu0 0
    %662 = vmatpush2.bf16.msra.mxu0 0
    %663 = vmatprep.subr.bf16.mxu0 0
    %664 = vmatpush2.bf16.msra.mxu0 0
    %665 = vmatprep.subr.bf16.mxu0 0
    %666 = vmatpush2.bf16.msra.mxu0 0
    %667 = vmatprep.subr.bf16.mxu0 0
    %668 = vmatpush2.bf16.msra.mxu0 0
    %669 = vmatprep.subr.bf16.mxu0 0
    %670 = vmatpush2.bf16.msra.mxu0 0
    %671 = vmatprep.subr.bf16.mxu0 0
    %672 = vmatpush2.bf16.msra.mxu0 0
    %673 = vmatprep.mubr.bf16.mxu0 0
    %674 = vmatmul.mubr.bf16.gmra.mxu0 %v639
    %v675 = vpop.f32.mrf.mxu0
    %v676 = vadd.f32 %v612, %v675
    %v677 = vpop.f32.mrf.mxu0
    %v678 = vpop.f32.mrf.mxu0
    %v679 = vadd.f32 %v612, %v678
    %v680 = vpop.f32.mrf.mxu0
    %681 = vdwg.mxu0
    %v682 = vadd.f32 %v531, %v676
    %v683 = vadd.f32 %v532, %v679
    %v684 = vsel %vm67, %v682, 0.0
    %685 = vadd.xlane.f32.xlu0 %v684
    %v686 = vpop.xlane.xlu0 %685
    %v687 = vsel %vm67, %v683, 0.0
    %688 = vadd.xlane.f32.xlu0 %v687
    %v689 = vpop.xlane.xlu0 %688
    %v690 = vmul.f32 %v686, %v500
    %v691 = vmul.f32 %v689, %v500
    %v692 = vsub.f32 %v682, %v690
    %v693 = vsub.f32 %v683, %v691
    %v694 = vmul.f32 %v692, %v692
    %v695 = vmul.f32 %v693, %v693
    %v696 = vsel %vm67, %v694, 0.0
    %697 = vadd.xlane.f32.xlu0 %v696
    %v698 = vpop.xlane.xlu0 %697
    %v699 = vsel %vm67, %v695, 0.0
    %700 = vadd.xlane.f32.xlu0 %v699
    %v701 = vpop.xlane.xlu0 %700
    %v702 = vmul.f32 %v698, %v500
    %v703 = vmul.f32 %v701, %v500
    %v704 = vadd.f32 %v702, 1e-05
    %v705 = vadd.f32 %v703, 1e-05
    %v706 = vrsqrt.pop %v704
    %v707 = vrsqrt.pop %v705
    %v708 = vmul.f32 %v692, %v706
    %v709 = vmul.f32 %v693, %v707
    %v710 = vlaneseq
    %v711 = vshrl.u32 %v710, 7
    %v712 = vsub.s32 0, %v711
    %v713 = vrot.slane %v36, %v712
    %v714 = vmul.f32 %v708, %v713
    %v715 = vmul.f32 %v709, %v713
    %v716 = vlaneseq
    %v717 = vshrl.u32 %v716, 7
    %v718 = vsub.s32 0, %v717
    %v719 = vrot.slane %v37, %v718
    %v720 = vadd.f32 %v714, %v719
    %v721 = vadd.f32 %v715, %v719
    %722 = vst.msk [vmem:[#allocation2] sm:$0xff] %vm67, %v720
    %723 = vst.msk [vmem:[#allocation2 + $0x8] sm:$0xff] %vm67, %v721
    // Predicated region
    $region30: #{tpu_custom_call.1} parent=1 // pred_check
      _
    $region31: #{tpu_custom_call.1} parent=1 // pred_check_branch
      %725 = sbr.rel (0) target = $region33
    $region32: #{tpu_custom_call.1} parent=1 // pred_region
      %s727 = ssub.s32 256, 256
      %728 = vsyncadd [#allocation3], %s727
      %s729 = sshll.u32 [#allocation2], 4
      %s730 = int_to_ptr.vmem [resolvable:$true] %s729
      %735 = dma.vmem_to_hbm [thread:$0]  %s730, 256, %s7, [#allocation3], 128, 128, 8
    $region33: #{tpu_custom_call.1} parent=1 // pred_fallthru
      _
    // Predicated region
    $region34: #{tpu_custom_call.1} parent=1 // pred_check
      _
    $region35: #{tpu_custom_call.1} parent=1 // pred_check_branch
      %737 = sbr.rel (0) target = $region37
    $region36: #{tpu_custom_call.1} parent=1 // pred_region
      %738 = dma.done [#allocation3], 256
    $region37: #{tpu_custom_call.1} parent=1 // pred_fallthru
      _
    %739 = vsyncpa [#allocation3], 1

</llo_original>
